<compile_context>
chip_gen: v7x
topology: tpu7x:2x2x1
jax: 0.10.0
libtpu: 0.0.40
codegen_flags: <defaults>
</compile_context>

<pallas_src>
import math
import functools

import jax
import jax.numpy as jnp
from jax import lax
from jax.experimental import pallas as pl
from jax.experimental.pallas import tpu as pltpu

_INV_SQRT2 = 1.0 / math.sqrt(2.0)


def _geglu_kernel(x_ref, wh_ref, wg_ref, bh_ref, bg_ref, o_ref,
                  acc_h_ref, acc_g_ref):
    # x_ref:  (tm, tk)        wh_ref/wg_ref: (tk, tn)
    # bh_ref/bg_ref: (1, tn)  o_ref: (tm, tn)
    # acc_h_ref/acc_g_ref: (tm, tn) f32 VMEM scratch, live across the K axis.
    k = pl.program_id(2)

    @pl.when(k == 0)
    def _():
        acc_h_ref[...] = jnp.zeros_like(acc_h_ref)
        acc_g_ref[...] = jnp.zeros_like(acc_g_ref)

    x = x_ref[...]
    acc_h_ref[...] += jnp.dot(x, wh_ref[...],
                              preferred_element_type=jnp.float32)
    acc_g_ref[...] += jnp.dot(x, wg_ref[...],
                              preferred_element_type=jnp.float32)

    @pl.when(k == pl.num_programs(2) - 1)
    def _():
        # Epilogue: bias + exact (erf) GELU gate, once per output tile, in f32.
        h = acc_h_ref[...] + bh_ref[...]
        g = acc_g_ref[...] + bg_ref[...]
        gelu_g = 0.5 * g * (1.0 + lax.erf(g * _INV_SQRT2))
        o_ref[...] = (h * gelu_g).astype(o_ref.dtype)


def _round_up(x, m):
    return (x + m - 1) // m * m


def prepare_geglu_params(weight, bias, *, compute_dtype=jnp.bfloat16,
                         tn=512, tk=512):
    """One-time weight layout work (hoisted out of the per-call hot path).

    weight: (2*dim_out, dim_in) PyTorch Linear layout; bias: (2*dim_out,)
    Returns (w_h, w_g, b_h, b_g, dim_out) with w_* of shape (Kp, Np) in
    `compute_dtype` and b_* of shape (1, Np) in f32.
    """
    weight = jnp.asarray(weight)
    bias = jnp.asarray(bias)
    two_n, K = weight.shape
    N = two_n // 2

    tn_ = min(tn, _round_up(N, 128))
    tk_ = min(tk, _round_up(K, 128))
    Np = _round_up(N, tn_)
    Kp = _round_up(K, tk_)

    w_h = weight[:N, :].T            # (dim_in, dim_out)
    w_g = weight[N:, :].T
    if (Kp, Np) != (K, N):
        pad = ((0, Kp - K), (0, Np - N))
        w_h = jnp.pad(w_h, pad)
        w_g = jnp.pad(w_g, pad)
    w_h = w_h.astype(compute_dtype)
    w_g = w_g.astype(compute_dtype)

    b_h = bias[:N].astype(jnp.float32).reshape(1, N)
    b_g = bias[N:].astype(jnp.float32).reshape(1, N)
    if Np != N:
        b_h = jnp.pad(b_h, ((0, 0), (0, Np - N)))
        b_g = jnp.pad(b_g, ((0, 0), (0, Np - N)))

    return w_h, w_g, b_h, b_g, N


@functools.partial(jax.jit, static_argnames=("dim_out", "tm", "tn", "tk"))
def geglu_prepared(x, w_h, w_g, b_h, b_g, *, dim_out, tm=512, tn=512, tk=512):
    """GEGLU forward given pre-prepared (split/transposed/padded) weights.

    x: (..., dim_in).  Returns (..., dim_out) in x.dtype.
    NOTE: tn/tk must match the values given to prepare_geglu_params.
    """
    *lead, dim_in = x.shape
    M = 1
    for d in lead:
        M *= d
    Kp, Np = w_h.shape
    out_dtype = x.dtype
    compute_dtype = w_h.dtype

    # Cast activations to the MXU-native operand dtype (bf16 by default).
    x2d = x.reshape(M, dim_in).astype(compute_dtype)

    elt = jnp.dtype(compute_dtype).itemsize
    out_elt = jnp.dtype(out_dtype).itemsize

    # Clamp tiles to (padded) problem size.  bf16 sublane packing wants >=16
    # rows; f32 needs >=8.
    sub = 16 if elt == 2 else 8
    tm_ = min(tm, _round_up(M, sub))
    tn_ = min(tn, Np)       # Np is a multiple of the effective tn (see prepare)
    tk_ = min(tk, Kp)

    Mp = _round_up(M, tm_)
    if (Mp, Kp) != (M, dim_in):
        x2d = jnp.pad(x2d, ((0, Mp - M), (0, Kp - dim_in)))

    grid = (Mp // tm_, Np // tn_, Kp // tk_)

    # Honest HBM traffic estimate incl. re-streaming factors.
    cost = pl.CostEstimate(
        flops=2 * 2 * Mp * Kp * Np,                      # two (M,K)x(K,N) matmuls
        transcendentals=Mp * Np,                         # erf in the epilogue
        bytes_accessed=(Np // tn_) * Mp * Kp * elt       # x read per N-tile
        + (Mp // tm_) * 2 * Kp * Np * elt                # both weights per M-tile
        + Mp * Np * out_elt,                             # output written once
    )

    # Double-buffered tile + accumulator footprint, with headroom; keep the
    # request within v7x's 64 MiB physical VMEM.
    footprint = (2 * tm_ * tk_ * elt          # x tile (double-buffered)
                 + 2 * 2 * tk_ * tn_ * elt    # W_h + W_g tiles (double-buffered)
                 + 2 * tm_ * tn_ * out_elt    # out tile (double-buffered)
                 + 2 * tm_ * tn_ * 4          # f32 accumulators
                 + 2 * 2 * tn_ * 4)           # biases
    vmem_limit = min(max(int(footprint * 1.5), 32 << 20), 64 << 20)

    out2d = pl.pallas_call(
        _geglu_kernel,
        out_shape=jax.ShapeDtypeStruct((Mp, Np), out_dtype),
        grid_spec=pltpu.PrefetchScalarGridSpec(
            num_scalar_prefetch=0,
            grid=grid,
            in_specs=[
                pl.BlockSpec((tm_, tk_), lambda i, j, k: (i, k)),   # x tile
                pl.BlockSpec((tk_, tn_), lambda i, j, k: (k, j)),   # W_h tile
                pl.BlockSpec((tk_, tn_), lambda i, j, k: (k, j)),   # W_g tile
                pl.BlockSpec((1, tn_), lambda i, j, k: (0, j)),     # b_h
                pl.BlockSpec((1, tn_), lambda i, j, k: (0, j)),     # b_g
            ],
            out_specs=pl.BlockSpec((tm_, tn_), lambda i, j, k: (i, j)),
            scratch_shapes=[
                pltpu.VMEM((tm_, tn_), jnp.float32),  # acc_h
                pltpu.VMEM((tm_, tn_), jnp.float32),  # acc_g
            ],
        ),
        compiler_params=pltpu.CompilerParams(
            dimension_semantics=("parallel", "parallel", "arbitrary"),
            vmem_limit_bytes=vmem_limit),
        cost_estimate=cost,
    )(x2d, w_h, w_g, b_h, b_g)

    return out2d[:M, :dim_out].reshape(*lead, dim_out)


def geglu(x, weight, bias, *, compute_dtype=jnp.bfloat16,
          tm=512, tn=512, tk=512):
    """Convenience wrapper: prepare weights, then call the jitted core.

    For inference, call prepare_geglu_params() ONCE at load time and reuse
    the result with geglu_prepared() to avoid re-transposing/padding weights
    on every call.
    """
    w_h, w_g, b_h, b_g, dim_out = prepare_geglu_params(
        weight, bias, compute_dtype=compute_dtype, tn=tn, tk=tk)
    return geglu_prepared(x, w_h, w_g, b_h, b_g, dim_out=dim_out,
                          tm=tm, tn=tn, tk=tk)


def geglu_reference(x, weight, bias):
    """Pure-JAX reference matching the PyTorch forward (scale=1.0)."""
    y = jnp.einsum("bsd,od->bso", x, weight) + bias
    h, g = jnp.split(y, 2, axis=-1)
    return h * jax.nn.gelu(g, approximate=False)


if __name__ == "__main__":
    # Small, forward-consistent shapes: batch=2, seq=8, dim_in=32, dim_out=32.
    batch, seq, dim_in, dim_out = 2, 8, 32, 32

    key = jax.random.PRNGKey(0)
    kx, kw, kb = jax.random.split(key, 3)

    x = jax.random.normal(kx, (batch, seq, dim_in), dtype=jnp.float32)
    # Deterministic "Linear(dim_in, 2*dim_out)" params (PyTorch weight layout).
    bound = 1.0 / math.sqrt(dim_in)
    weight = jax.random.uniform(kw, (2 * dim_out, dim_in),
                                minval=-bound, maxval=bound, dtype=jnp.float32)
    bias = jax.random.uniform(kb, (2 * dim_out,),
                              minval=-bound, maxval=bound, dtype=jnp.float32)

    # --- default bf16-operand path (weights prepared once, core jitted). ----
    w_h, w_g, b_h, b_g, n_out = prepare_geglu_params(weight, bias)
    out_bf16 = geglu_prepared(x, w_h, w_g, b_h, b_g, dim_out=n_out)
    out_bf16 = jax.block_until_ready(out_bf16)
    assert out_bf16.shape == (batch, seq, dim_out)

    # Reference with identically bf16-rounded operands (accumulation f32).
    x_r = x.astype(jnp.bfloat16).astype(jnp.float32)
    w_r = weight.astype(jnp.bfloat16).astype(jnp.float32)
    ref_bf16 = geglu_reference(x_r, w_r, bias)
    assert jnp.allclose(out_bf16, ref_bf16, atol=2e-3, rtol=2e-3)

    # --- optional f32-operand path, exact against the PyTorch semantics. ----
    out_f32 = geglu(x, weight, bias, compute_dtype=jnp.float32)
    out_f32 = jax.block_until_ready(out_f32)
    ref_f32 = geglu_reference(x, weight, bias)
    assert jnp.allclose(out_f32, ref_f32, atol=1e-5, rtol=1e-5)

    print("KERNEL_OK")
</pallas_src>

<mosaic_0001>
module attributes {stable_mosaic.version = 11 : i64} {
  func.func @_geglu_kernel(%arg0: i32, %arg1: i32, %arg2: i32, %arg3: memref<16x128xbf16, #tpu.memory_space<vmem>>, %arg4: memref<128x128xbf16, #tpu.memory_space<vmem>>, %arg5: memref<128x128xbf16, #tpu.memory_space<vmem>>, %arg6: memref<1x128xf32, #tpu.memory_space<vmem>>, %arg7: memref<1x128xf32, #tpu.memory_space<vmem>>, %arg8: memref<16x128xf32, #tpu.memory_space<vmem>>, %arg9: memref<16x128xf32, #tpu.memory_space<vmem>>, %arg10: memref<16x128xf32, #tpu.memory_space<vmem>>) attributes {dimension_semantics = [#tpu.dimension_semantics<parallel>, #tpu.dimension_semantics<parallel>, #tpu.dimension_semantics<arbitrary>], iteration_bounds = array<i64: 1, 1, 1>, scalar_prefetch = 0 : i64, scratch_operands = 2 : i64, tpu.core_type = #tpu.core_type<tc>, window_params = [{transform_indices = @transform_0, window_bounds = array<i64: 16, 128>}, {transform_indices = @transform_1, window_bounds = array<i64: 128, 128>}, {transform_indices = @transform_2, window_bounds = array<i64: 128, 128>}, {transform_indices = @transform_3, window_bounds = array<i64: 1, 128>}, {transform_indices = @transform_4, window_bounds = array<i64: 1, 128>}, {transform_indices = @transform_5, window_bounds = array<i64: 16, 128>}]} {
    %c0_i32 = arith.constant 0 : i32
    %0 = arith.cmpi eq, %arg2, %c0_i32 : i32
    %1 = arith.extui %0 : i1 to i32
    %c0_i32_0 = arith.constant 0 : i32
    %2 = arith.cmpi ne, %1, %c0_i32_0 : i32
    scf.if %2 {
      %cst_17 = arith.constant 0.000000e+00 : f32
      %17 = vector.broadcast %cst_17 : f32 to vector<16x128xf32>
      %c0_18 = arith.constant 0 : index
      %c0_19 = arith.constant 0 : index
      %18 = vector.load %arg9[%c0_18, %c0_19] : memref<16x128xf32, #tpu.memory_space<vmem>>, vector<16x128xf32>
      tpu.vector_store %arg9[%c0_18, %c0_19], %17 {strides = array<i32>} : memref<16x128xf32, #tpu.memory_space<vmem>>, vector<16x128xf32>,
      %cst_20 = arith.constant 0.000000e+00 : f32
      %19 = vector.broadcast %cst_20 : f32 to vector<16x128xf32>
      %c0_21 = arith.constant 0 : index
      %c0_22 = arith.constant 0 : index
      %20 = vector.load %arg10[%c0_21, %c0_22] : memref<16x128xf32, #tpu.memory_space<vmem>>, vector<16x128xf32>
      tpu.vector_store %arg10[%c0_21, %c0_22], %19 {strides = array<i32>} : memref<16x128xf32, #tpu.memory_space<vmem>>, vector<16x128xf32>,
    } else {
    }
    %c0 = arith.constant 0 : index
    %c0_1 = arith.constant 0 : index
    %3 = vector.load %arg3[%c0, %c0_1] : memref<16x128xbf16, #tpu.memory_space<vmem>>, vector<16x128xbf16>
    %c0_2 = arith.constant 0 : index
    %c0_3 = arith.constant 0 : index
    %4 = vector.load %arg9[%c0_2, %c0_3] : memref<16x128xf32, #tpu.memory_space<vmem>>, vector<16x128xf32>
    %c0_4 = arith.constant 0 : index
    %c0_5 = arith.constant 0 : index
    %5 = vector.load %arg4[%c0_4, %c0_5] : memref<128x128xbf16, #tpu.memory_space<vmem>>, vector<128x128xbf16>
    %cst = arith.constant dense<0.000000e+00> : vector<16x128xf32>
    %6 = tpu.matmul %3, %5, %cst {dimension_numbers = #tpu.dot_dimension_numbers<[1], [0], [0], [1], [0, 0, 1, 1], [], []>} : vector<16x128xbf16>, vector<128x128xbf16>, vector<16x128xf32> -> vector<16x128xf32>
    %7 = arith.addf %4, %6 : vector<16x128xf32>
    %c0_6 = arith.constant 0 : index
    %c0_7 = arith.constant 0 : index
    %8 = vector.load %arg9[%c0_6, %c0_7] : memref<16x128xf32, #tpu.memory_space<vmem>>, vector<16x128xf32>
    tpu.vector_store %arg9[%c0_6, %c0_7], %7 {strides = array<i32>} : memref<16x128xf32, #tpu.memory_space<vmem>>, vector<16x128xf32>,
    %c0_8 = arith.constant 0 : index
    %c0_9 = arith.constant 0 : index
    %9 = vector.load %arg10[%c0_8, %c0_9] : memref<16x128xf32, #tpu.memory_space<vmem>>, vector<16x128xf32>
    %c0_10 = arith.constant 0 : index
    %c0_11 = arith.constant 0 : index
    %10 = vector.load %arg5[%c0_10, %c0_11] : memref<128x128xbf16, #tpu.memory_space<vmem>>, vector<128x128xbf16>
    %cst_12 = arith.constant dense<0.000000e+00> : vector<16x128xf32>
    %11 = tpu.matmul %3, %10, %cst_12 {dimension_numbers = #tpu.dot_dimension_numbers<[1], [0], [0], [1], [0, 0, 1, 1], [], []>} : vector<16x128xbf16>, vector<128x128xbf16>, vector<16x128xf32> -> vector<16x128xf32>
    %12 = arith.addf %9, %11 : vector<16x128xf32>
    %c0_13 = arith.constant 0 : index
    %c0_14 = arith.constant 0 : index
    %13 = vector.load %arg10[%c0_13, %c0_14] : memref<16x128xf32, #tpu.memory_space<vmem>>, vector<16x128xf32>
    tpu.vector_store %arg10[%c0_13, %c0_14], %12 {strides = array<i32>} : memref<16x128xf32, #tpu.memory_space<vmem>>, vector<16x128xf32>,
    %c0_i32_15 = arith.constant 0 : i32
    %14 = arith.cmpi eq, %arg2, %c0_i32_15 : i32
    %15 = arith.extui %14 : i1 to i32
    %c0_i32_16 = arith.constant 0 : i32
    %16 = arith.cmpi ne, %15, %c0_i32_16 : i32
    scf.if %16 {
      %c0_17 = arith.constant 0 : index
      %c0_18 = arith.constant 0 : index
      %17 = vector.load %arg9[%c0_17, %c0_18] : memref<16x128xf32, #tpu.memory_space<vmem>>, vector<16x128xf32>
      %c0_19 = arith.constant 0 : index
      %c0_20 = arith.constant 0 : index
      %18 = vector.load %arg6[%c0_19, %c0_20] : memref<1x128xf32, #tpu.memory_space<vmem>>, vector<1x128xf32>
      %19 = vector.broadcast %18 : vector<1x128xf32> to vector<16x128xf32>
      %20 = arith.addf %17, %19 : vector<16x128xf32>
      %c0_21 = arith.constant 0 : index
      %c0_22 = arith.constant 0 : index
      %21 = vector.load %arg10[%c0_21, %c0_22] : memref<16x128xf32, #tpu.memory_space<vmem>>, vector<16x128xf32>
      %c0_23 = arith.constant 0 : index
      %c0_24 = arith.constant 0 : index
      %22 = vector.load %arg7[%c0_23, %c0_24] : memref<1x128xf32, #tpu.memory_space<vmem>>, vector<1x128xf32>
      %23 = vector.broadcast %22 : vector<1x128xf32> to vector<16x128xf32>
      %24 = arith.addf %21, %23 : vector<16x128xf32>
      %cst_25 = arith.constant 5.000000e-01 : f32
      %25 = vector.broadcast %cst_25 : f32 to vector<16x128xf32>
      %26 = arith.mulf %25, %24 : vector<16x128xf32>
      %cst_26 = arith.constant 0.707106769 : f32
      %27 = vector.broadcast %cst_26 : f32 to vector<16x128xf32>
      %28 = arith.mulf %24, %27 : vector<16x128xf32>
      %29 = math.erf %28 : vector<16x128xf32>
      %cst_27 = arith.constant 1.000000e+00 : f32
      %30 = vector.broadcast %cst_27 : f32 to vector<16x128xf32>
      %31 = arith.addf %30, %29 : vector<16x128xf32>
      %32 = arith.mulf %26, %31 : vector<16x128xf32>
      %33 = arith.mulf %20, %32 : vector<16x128xf32>
      %c0_28 = arith.constant 0 : index
      %c0_29 = arith.constant 0 : index
      %34 = vector.load %arg8[%c0_28, %c0_29] : memref<16x128xf32, #tpu.memory_space<vmem>>, vector<16x128xf32>
      tpu.vector_store %arg8[%c0_28, %c0_29], %33 {strides = array<i32>} : memref<16x128xf32, #tpu.memory_space<vmem>>, vector<16x128xf32>,
    } else {
    }
    return
  }
  func.func @transform_0(%arg0: i32, %arg1: i32, %arg2: i32) -> (i32, i32) {
    %c0_i32 = arith.constant 0 : i32
    return %arg0, %arg2 : i32, i32
  }
  func.func @transform_1(%arg0: i32, %arg1: i32, %arg2: i32) -> (i32, i32) {
    %c0_i32 = arith.constant 0 : i32
    return %arg2, %arg1 : i32, i32
  }
  func.func @transform_2(%arg0: i32, %arg1: i32, %arg2: i32) -> (i32, i32) {
    %c0_i32 = arith.constant 0 : i32
    return %arg2, %arg1 : i32, i32
  }
  func.func @transform_3(%arg0: i32, %arg1: i32, %arg2: i32) -> (i32, i32) {
    %c0_i32 = arith.constant 0 : i32
    %c0_i32_0 = arith.constant 0 : i32
    return %c0_i32, %arg1 : i32, i32
  }
  func.func @transform_4(%arg0: i32, %arg1: i32, %arg2: i32) -> (i32, i32) {
    %c0_i32 = arith.constant 0 : i32
    %c0_i32_0 = arith.constant 0 : i32
    return %c0_i32, %arg1 : i32, i32
  }
  func.func @transform_5(%arg0: i32, %arg1: i32, %arg2: i32) -> (i32, i32) {
    %c0_i32 = arith.constant 0 : i32
    return %arg0, %arg1 : i32, i32
  }
}

</mosaic_0001>

<llo_original>
// kernel: geglu_prepared.1
$region0: #{geglu_prepared.1}
  #allocation0 [shape = 'u32[]', space=smem, size = 0x4, offset = 0x4, fixed_abs, tag = 'smem constant byte address 0x4 - core index']
  #allocation1 [shape = 'u32[144,128]{1,0:T(1,128)}', space=vmem, size = 0x12000, scoped, tag = 'internal scratch']
  #allocation2 [shape = 'f32[16,128]{1,0:T(8,128)}', space=vmem, size = 0x2000, scoped, tag = 'scratch operand']
  #allocation3 [shape = 'f32[16,128]{1,0:T(8,128)}', space=vmem, size = 0x2000, scoped, tag = 'scratch operand']
  %s0 = inlined_call_operand.vmem [shape: bf16[16,128], index: 0, kind: input, shape index: {}]
  %s1 = inlined_call_operand.hbm [shape: bf16[128,128], index: 1, kind: input, shape index: {}]
  %s2 = inlined_call_operand.hbm [shape: bf16[128,128], index: 2, kind: input, shape index: {}]
  %s3 = inlined_call_operand.vmem [shape: f32[1,128], index: 3, kind: input, shape index: {}]
  %s4 = inlined_call_operand.vmem [shape: f32[1,128], index: 4, kind: input, shape index: {}]
  %s5 = inlined_call_operand.vmem [shape: f32[16,128], index: 5, kind: output, shape index: {}]
  %s6 = sld [smem:[#allocation0]]
  $region46: #{geglu_prepared.1} parent=0
    _
  %s8 = ssub.s32 1, %s6
  %s9 = scalar_select 0, %s8, %s6
  $region1: #{geglu_prepared.1} parent=0
    #allocation4 [shape = 'u8[32768]{0}', space=vmem, size = 0x8000, scoped, tag = 'input window, operand 1, single buffered']
    #allocation5 [shape = 's32[1]{0}', space=sflag, size = 0x4, scoped, tag = 'scoped memory for geglu_prepared.1']
    #allocation6 [shape = 'u8[32768]{0}', space=vmem, size = 0x8000, scoped, tag = 'input window, operand 2, single buffered']
    #allocation7 [shape = 's32[1]{0}', space=sflag, size = 0x4, scoped, tag = 'scoped memory for geglu_prepared.1']
    %10 = vsyncpa [#allocation5], 0
    %11 = vsyncpa [#allocation7], 0
    // Predicated region
    $region2: #{geglu_prepared.1} parent=1 // pred_check
      _
    $region3: #{geglu_prepared.1} parent=1 // pred_check_branch
      %13 = sbr.rel (0) target = $region5
    $region4: #{geglu_prepared.1} parent=1 // pred_region
      _
    $region5: #{geglu_prepared.1} parent=1 // pred_fallthru
      _
    // Predicated region
    $region6: #{geglu_prepared.1} parent=1 // pred_check
      _
    $region7: #{geglu_prepared.1} parent=1 // pred_check_branch
      %15 = sbr.rel (0) target = $region9
    $region8: #{geglu_prepared.1} parent=1 // pred_region
      %s17 = ssub.s32 1024, 1024
      %18 = vsyncadd [#allocation5], %s17
      %s19 = sshll.u32 [#allocation4], 4
      %s20 = int_to_ptr.vmem [resolvable:$true] %s19
      %25 = dma.hbm_to_vmem [thread:$0]  %s1, 1024, %s20, [#allocation5], 64, 64, 4
    $region9: #{geglu_prepared.1} parent=1 // pred_fallthru
      _
    // Predicated region
    $region10: #{geglu_prepared.1} parent=1 // pred_check
      _
    $region11: #{geglu_prepared.1} parent=1 // pred_check_branch
      %27 = sbr.rel (0) target = $region13
    $region12: #{geglu_prepared.1} parent=1 // pred_region
      %s29 = ssub.s32 1024, 1024
      %30 = vsyncadd [#allocation7], %s29
      %s31 = sshll.u32 [#allocation6], 4
      %s32 = int_to_ptr.vmem [resolvable:$true] %s31
      %37 = dma.hbm_to_vmem [thread:$0]  %s2, 1024, %s32, [#allocation7], 64, 64, 4
    $region13: #{geglu_prepared.1} parent=1 // pred_fallthru
      _
    // Predicated region
    $region14: #{geglu_prepared.1} parent=1 // pred_check
      _
    $region15: #{geglu_prepared.1} parent=1 // pred_check_branch
      %39 = sbr.rel (0) target = $region17
    $region16: #{geglu_prepared.1} parent=1 // pred_region
      _
    $region17: #{geglu_prepared.1} parent=1 // pred_fallthru
      _
    // Predicated region
    $region18: #{geglu_prepared.1} parent=1 // pred_check
      _
    $region19: #{geglu_prepared.1} parent=1 // pred_check_branch
      %41 = sbr.rel (0) target = $region21
    $region20: #{geglu_prepared.1} parent=1 // pred_region
      _
    $region21: #{geglu_prepared.1} parent=1 // pred_fallthru
      _
    // Predicated region
    $region22: #{geglu_prepared.1} parent=1 // pred_check
      _
    $region23: #{geglu_prepared.1} parent=1 // pred_check_branch
      %43 = sbr.rel (0) target = $region25
    $region24: #{geglu_prepared.1} parent=1 // pred_region
      %44 = dma.done [#allocation5], 1024
    $region25: #{geglu_prepared.1} parent=1 // pred_fallthru
      _
    // Predicated region
    $region26: #{geglu_prepared.1} parent=1 // pred_check
      _
    $region27: #{geglu_prepared.1} parent=1 // pred_check_branch
      %46 = sbr.rel (0) target = $region29
    $region28: #{geglu_prepared.1} parent=1 // pred_region
      %47 = dma.done [#allocation7], 1024
    $region29: #{geglu_prepared.1} parent=1 // pred_fallthru
      _
    %p49 = scmp.eq.s32.totalorder 0, 0
    // Predicated region
    $region30: #{geglu_prepared.1} parent=1 // pred_check
      %p50 = pneg %p49
    $region31: #{geglu_prepared.1} parent=1 // pred_check_branch
      %52 = sbr.rel (%p50) target = $region33
    $region32: #{geglu_prepared.1} parent=1 // pred_region
      %53 = vst [vmem:[#allocation2] sm:$0xff] 0.0
      %54 = vst [vmem:[#allocation2 + $0x8] sm:$0xff] 0.0
      %55 = vst [vmem:[#allocation3] sm:$0xff] 0.0
      %56 = vst [vmem:[#allocation3 + $0x8] sm:$0xff] 0.0
    $region33: #{geglu_prepared.1} parent=1 // pred_fallthru
      _
    %v57 = vld [vmem:[%s0] sm:$0xf]
    %v58 = vld [vmem:[%s0 + $0x4] sm:$0xf]
    %v59 = vld [vmem:[#allocation2] sm:$0xff]
    %v60 = vld [vmem:[#allocation2 + $0x8] sm:$0xff]
    %v61 = vld [vmem:[#allocation4] sm:$0xf]
    %v62 = vld [vmem:[#allocation4 + $0x4] sm:$0xf]
    %v63 = vld [vmem:[#allocation4 + $0x8] sm:$0xf]
    %v64 = vld [vmem:[#allocation4 + $0xc] sm:$0xf]
    %v65 = vld [vmem:[#allocation4 + $0x10] sm:$0xf]
    %v66 = vld [vmem:[#allocation4 + $0x14] sm:$0xf]
    %v67 = vld [vmem:[#allocation4 + $0x18] sm:$0xf]
    %v68 = vld [vmem:[#allocation4 + $0x1c] sm:$0xf]
    %v69 = vld [vmem:[#allocation4 + $0x20] sm:$0xf]
    %v70 = vld [vmem:[#allocation4 + $0x24] sm:$0xf]
    %v71 = vld [vmem:[#allocation4 + $0x28] sm:$0xf]
    %v72 = vld [vmem:[#allocation4 + $0x2c] sm:$0xf]
    %v73 = vld [vmem:[#allocation4 + $0x30] sm:$0xf]
    %v74 = vld [vmem:[#allocation4 + $0x34] sm:$0xf]
    %v75 = vld [vmem:[#allocation4 + $0x38] sm:$0xf]
    %v76 = vld [vmem:[#allocation4 + $0x3c] sm:$0xf]
    %v79 = vunpack.c.l.b16 %v57
    %v80 = vunpack.c.l.b16 %v58
    %v81 = vpack.c.b16 %v80, %v79
    %v99 = vunpack.c.l.b16 %v61
    %v100 = vunpack.c.l.b16 %v62
    %v101 = vunpack.c.l.b16 %v63
    %v102 = vunpack.c.l.b16 %v64
    %v103 = vunpack.c.l.b16 %v65
    %v104 = vunpack.c.l.b16 %v66
    %v105 = vunpack.c.l.b16 %v67
    %v106 = vunpack.c.l.b16 %v68
    %v107 = vunpack.c.l.b16 %v69
    %v108 = vunpack.c.l.b16 %v70
    %v109 = vunpack.c.l.b16 %v71
    %v110 = vunpack.c.l.b16 %v72
    %v111 = vunpack.c.l.b16 %v73
    %v112 = vunpack.c.l.b16 %v74
    %v113 = vunpack.c.l.b16 %v75
    %v114 = vunpack.c.l.b16 %v76
    %v115 = vpack.c.b16 %v100, %v99
    %v116 = vpack.c.b16 %v102, %v101
    %v117 = vpack.c.b16 %v104, %v103
    %v118 = vpack.c.b16 %v106, %v105
    %v119 = vpack.c.b16 %v108, %v107
    %v120 = vpack.c.b16 %v110, %v109
    %v121 = vpack.c.b16 %v112, %v111
    %v122 = vpack.c.b16 %v114, %v113
    %131 = vmatprep.subr.bf16.mxu0 0
    %132 = vmatpush1.bf16.msra.mxu0 %v115
    %133 = vmatprep.subr.bf16.mxu0 0
    %134 = vmatpush1.bf16.msra.mxu0 %v116
    %135 = vmatprep.subr.bf16.mxu0 0
    %136 = vmatpush1.bf16.msra.mxu0 %v117
    %137 = vmatprep.subr.bf16.mxu0 0
    %138 = vmatpush1.bf16.msra.mxu0 %v118
    %139 = vmatprep.subr.bf16.mxu0 0
    %140 = vmatpush1.bf16.msra.mxu0 %v119
    %141 = vmatprep.subr.bf16.mxu0 0
    %142 = vmatpush1.bf16.msra.mxu0 %v120
    %143 = vmatprep.subr.bf16.mxu0 0
    %144 = vmatpush1.bf16.msra.mxu0 %v121
    %145 = vmatprep.subr.bf16.mxu0 0
    %146 = vmatpush1.bf16.msra.mxu0 %v122
    %147 = vmatprep.subr.bf16.mxu0 0
    %148 = vmatpush1.bf16.msra.mxu0 0
    %149 = vmatprep.subr.bf16.mxu0 0
    %150 = vmatpush1.bf16.msra.mxu0 0
    %151 = vmatprep.subr.bf16.mxu0 0
    %152 = vmatpush1.bf16.msra.mxu0 0
    %153 = vmatprep.subr.bf16.mxu0 0
    %154 = vmatpush1.bf16.msra.mxu0 0
    %155 = vmatprep.subr.bf16.mxu0 0
    %156 = vmatpush1.bf16.msra.mxu0 0
    %157 = vmatprep.subr.bf16.mxu0 0
    %158 = vmatpush1.bf16.msra.mxu0 0
    %159 = vmatprep.subr.bf16.mxu0 0
    %160 = vmatpush1.bf16.msra.mxu0 0
    %161 = vmatprep.subr.bf16.mxu0 0
    %162 = vmatpush1.bf16.msra.mxu0 0
    %163 = vmatprep.mubr.bf16.mxu0 0
    %164 = vmatmul.mubr.bf16.gmra.mrb[0].mxu0 %v81
    %v165 = vpop.f32.mrb[0].mxu0
    %v166 = vadd.f32 0.0, %v165
    %v167 = vpop.f32.mrb[0].mxu0
    %v168 = vpop.f32.mrb[0].mxu0
    %v169 = vadd.f32 0.0, %v168
    %v170 = vpop.f32.mrb[0].mxu0
    %171 = vdwg.mxu0
    %v172 = vadd.f32 %v59, %v166
    %v173 = vadd.f32 %v60, %v169
    %174 = vst [vmem:[#allocation2] sm:$0xff] %v172
    %175 = vst [vmem:[#allocation2 + $0x8] sm:$0xff] %v173
    %v176 = vld [vmem:[#allocation3] sm:$0xff]
    %v177 = vld [vmem:[#allocation3 + $0x8] sm:$0xff]
    %v178 = vld [vmem:[#allocation6] sm:$0xf]
    %v179 = vld [vmem:[#allocation6 + $0x4] sm:$0xf]
    %v180 = vld [vmem:[#allocation6 + $0x8] sm:$0xf]
    %v181 = vld [vmem:[#allocation6 + $0xc] sm:$0xf]
    %v182 = vld [vmem:[#allocation6 + $0x10] sm:$0xf]
    %v183 = vld [vmem:[#allocation6 + $0x14] sm:$0xf]
    %v184 = vld [vmem:[#allocation6 + $0x18] sm:$0xf]
    %v185 = vld [vmem:[#allocation6 + $0x1c] sm:$0xf]
    %v186 = vld [vmem:[#allocation6 + $0x20] sm:$0xf]
    %v187 = vld [vmem:[#allocation6 + $0x24] sm:$0xf]
    %v188 = vld [vmem:[#allocation6 + $0x28] sm:$0xf]
    %v189 = vld [vmem:[#allocation6 + $0x2c] sm:$0xf]
    %v190 = vld [vmem:[#allocation6 + $0x30] sm:$0xf]
    %v191 = vld [vmem:[#allocation6 + $0x34] sm:$0xf]
    %v192 = vld [vmem:[#allocation6 + $0x38] sm:$0xf]
    %v193 = vld [vmem:[#allocation6 + $0x3c] sm:$0xf]
    %v210 = vunpack.c.l.b16 %v178
    %v211 = vunpack.c.l.b16 %v179
    %v212 = vunpack.c.l.b16 %v180
    %v213 = vunpack.c.l.b16 %v181
    %v214 = vunpack.c.l.b16 %v182
    %v215 = vunpack.c.l.b16 %v183
    %v216 = vunpack.c.l.b16 %v184
    %v217 = vunpack.c.l.b16 %v185
    %v218 = vunpack.c.l.b16 %v186
    %v219 = vunpack.c.l.b16 %v187
    %v220 = vunpack.c.l.b16 %v188
    %v221 = vunpack.c.l.b16 %v189
    %v222 = vunpack.c.l.b16 %v190
    %v223 = vunpack.c.l.b16 %v191
    %v224 = vunpack.c.l.b16 %v192
    %v225 = vunpack.c.l.b16 %v193
    %v226 = vpack.c.b16 %v211, %v210
    %v227 = vpack.c.b16 %v213, %v212
    %v228 = vpack.c.b16 %v215, %v214
    %v229 = vpack.c.b16 %v217, %v216
    %v230 = vpack.c.b16 %v219, %v218
    %v231 = vpack.c.b16 %v221, %v220
    %v232 = vpack.c.b16 %v223, %v222
    %v233 = vpack.c.b16 %v225, %v224
    %242 = vmatprep.subr.bf16.mxu0 0
    %243 = vmatpush1.bf16.msra.mxu0 %v226
    %244 = vmatprep.subr.bf16.mxu0 0
    %245 = vmatpush1.bf16.msra.mxu0 %v227
    %246 = vmatprep.subr.bf16.mxu0 0
    %247 = vmatpush1.bf16.msra.mxu0 %v228
    %248 = vmatprep.subr.bf16.mxu0 0
    %249 = vmatpush1.bf16.msra.mxu0 %v229
    %250 = vmatprep.subr.bf16.mxu0 0
    %251 = vmatpush1.bf16.msra.mxu0 %v230
    %252 = vmatprep.subr.bf16.mxu0 0
    %253 = vmatpush1.bf16.msra.mxu0 %v231
    %254 = vmatprep.subr.bf16.mxu0 0
    %255 = vmatpush1.bf16.msra.mxu0 %v232
    %256 = vmatprep.subr.bf16.mxu0 0
    %257 = vmatpush1.bf16.msra.mxu0 %v233
    %258 = vmatprep.subr.bf16.mxu0 0
    %259 = vmatpush1.bf16.msra.mxu0 0
    %260 = vmatprep.subr.bf16.mxu0 0
    %261 = vmatpush1.bf16.msra.mxu0 0
    %262 = vmatprep.subr.bf16.mxu0 0
    %263 = vmatpush1.bf16.msra.mxu0 0
    %264 = vmatprep.subr.bf16.mxu0 0
    %265 = vmatpush1.bf16.msra.mxu0 0
    %266 = vmatprep.subr.bf16.mxu0 0
    %267 = vmatpush1.bf16.msra.mxu0 0
    %268 = vmatprep.subr.bf16.mxu0 0
    %269 = vmatpush1.bf16.msra.mxu0 0
    %270 = vmatprep.subr.bf16.mxu0 0
    %271 = vmatpush1.bf16.msra.mxu0 0
    %272 = vmatprep.subr.bf16.mxu0 0
    %273 = vmatpush1.bf16.msra.mxu0 0
    %274 = vmatprep.mubr.bf16.mxu0 0
    %275 = vmatmul.mubr.bf16.gmra.mrb[0].mxu0 %v81
    %v276 = vpop.f32.mrb[0].mxu0
    %v277 = vadd.f32 0.0, %v276
    %v278 = vpop.f32.mrb[0].mxu0
    %v279 = vpop.f32.mrb[0].mxu0
    %v280 = vadd.f32 0.0, %v279
    %v281 = vpop.f32.mrb[0].mxu0
    %282 = vdwg.mxu0
    %v283 = vadd.f32 %v176, %v277
    %v284 = vadd.f32 %v177, %v280
    %285 = vst [vmem:[#allocation3] sm:$0xff] %v283
    %286 = vst [vmem:[#allocation3 + $0x8] sm:$0xff] %v284
    // Predicated region
    $region34: #{geglu_prepared.1} parent=1 // pred_check
      %p287 = pneg %p49
    $region35: #{geglu_prepared.1} parent=1 // pred_check_branch
      %289 = sbr.rel (%p287) target = $region37
    $region36: #{geglu_prepared.1} parent=1 // pred_region
      %v290 = vld [vmem:[#allocation2] sm:$0xff]
      %v291 = vld [vmem:[#allocation2 + $0x8] sm:$0xff]
      %v292 = vld [vmem:[%s3] sm:$0x1]
      %v294 = vlaneseq
      %v295 = vshrl.u32 %v294, 7
      %v296 = vsub.s32 0, %v295
      %v297 = vrot.slane %v292, %v296
      %v299 = vadd.f32 %v290, %v297
      %v300 = vadd.f32 %v291, %v297
      %v301 = vld [vmem:[#allocation3] sm:$0xff]
      %v302 = vld [vmem:[#allocation3 + $0x8] sm:$0xff]
      %v303 = vld [vmem:[%s4] sm:$0x1]
      %v305 = vlaneseq
      %v306 = vshrl.u32 %v305, 7
      %v307 = vsub.s32 0, %v306
      %v308 = vrot.slane %v303, %v307
      %v310 = vadd.f32 %v301, %v308
      %v311 = vadd.f32 %v302, %v308
      %v312 = vmul.f32 %v310, 0.5
      %v313 = vmul.f32 %v311, 0.5
      %v314 = vmul.f32 %v310, 0.70710677
      %v315 = vmul.f32 %v311, 0.70710677
      %v316 = verf.f32.pop %v314
      %v317 = verf.f32.pop %v315
      %v318 = vadd.f32 %v316, 1.0
      %v319 = vadd.f32 %v317, 1.0
      %v320 = vmul.f32 %v312, %v318
      %v321 = vmul.f32 %v313, %v319
      %v322 = vmul.f32 %v299, %v320
      %v323 = vmul.f32 %v300, %v321
      %324 = vst [vmem:[%s5] sm:$0xff] %v322
      %325 = vst [vmem:[%s5 + $0x8] sm:$0xff] %v323
    $region37: #{geglu_prepared.1} parent=1 // pred_fallthru
      _
    // Predicated region
    $region38: #{geglu_prepared.1} parent=1 // pred_check
      _
    $region39: #{geglu_prepared.1} parent=1 // pred_check_branch
      %327 = sbr.rel (0) target = $region41
    $region40: #{geglu_prepared.1} parent=1 // pred_region
      _
    $region41: #{geglu_prepared.1} parent=1 // pred_fallthru
      _
    // Predicated region
    $region42: #{geglu_prepared.1} parent=1 // pred_check
      _
    $region43: #{geglu_prepared.1} parent=1 // pred_check_branch
      %329 = sbr.rel (0) target = $region45
    $region44: #{geglu_prepared.1} parent=1 // pred_region
      _
    $region45: #{geglu_prepared.1} parent=1 // pred_fallthru
      _
    %330 = vsyncpa [#allocation5], 1
    %331 = vsyncpa [#allocation7], 1

</llo_original>
